<compile_context>
chip_gen: v6e
topology: v6e:2x2x1
jax: 0.10.0
libtpu: 0.0.40
codegen_flags: <defaults>
</compile_context>

<pallas_src>
import jax
import jax.numpy as jnp
from jax.experimental import pallas as pl
from jax.experimental.pallas import tpu as pltpu


def _broadcast_token_kernel(tok_ref, out_ref):
    # tok_ref: (1, 1, dim) resident token tile; out_ref: (tb, tn, dim) block.
    out_ref[...] = jnp.broadcast_to(tok_ref[...], out_ref.shape)


def learnable_masked_token_forward(x, token, *, target_block_bytes=8 * 1024 * 1024):
    """Reproduce LearnableMaskedTokenLayer.forward.

    Args:
      x: array with shape (b, n, ...) -- only its leading two dims are used.
      token: learnable token of shape (dim,).

    Returns:
      Array of shape (b, n, dim), dtype of `token`.
    """
    b, n = x.shape[:2]
    (dim,) = token.shape
    dtype = token.dtype
    itemsize = jnp.dtype(dtype).itemsize
    sublane = max(8, 32 // itemsize)   # 8 for f32, 16 for bf16, 32 for int8
    lane = 128

    # VMEM/HBM tiles pad the minor dim to 128 lanes; size blocks by the padded
    # footprint so the double-buffered output never blows the VMEM budget.
    padded_dim = ((dim + lane - 1) // lane) * lane
    row_bytes = padded_dim * itemsize
    total_bytes = b * n * row_bytes

    # Per-generation VMEM budget (v7x: 64 MiB physical, v5e/v6e: 128 MiB).
    try:
        vmem_cap = int(pltpu.get_tpu_info().vmem_capacity_bytes)
    except Exception:
        vmem_cap = 64 * 1024 * 1024     # conservative (v7x-sized) fallback
    usable = (vmem_cap * 3) // 8        # ~24 MiB on v7x, ~48 MiB on v5e/v6e
    block_bytes = max(row_bytes, min(target_block_bytes, usable // 2))

    # Pick (tb, tn): rows per block, preferring full-n blocks spanning batches.
    rows_per_block = max(1, block_bytes // row_bytes)
    if rows_per_block >= n:
        tn = n
        tb = max(1, min(b, rows_per_block // n))
    else:
        tb = 1
        tn = min(n, max(sublane, (rows_per_block // sublane) * sublane))

    # Never collapse a multi-MiB output onto a 1-step grid: >= 4 steps keeps
    # v7x's two TensorCores busy and the fill/writeback pipeline overlapped.
    min_steps = 4 if total_bytes > (4 << 20) else 1

    def _steps(tb_, tn_):
        return pl.cdiv(b, tb_) * pl.cdiv(n, tn_)

    while _steps(tb, tn) < min_steps and tb > 1:
        tb = max(1, tb // 2)
    while _steps(tb, tn) < min_steps and tn > sublane:
        half = ((tn // 2 + sublane - 1) // sublane) * sublane
        if half >= tn:
            break
        tn = half

    grid = (pl.cdiv(b, tb), pl.cdiv(n, tn))

    # Explicit VMEM limit: double-buffered output block + resident token + slack.
    padded_tn = ((tn + sublane - 1) // sublane) * sublane
    block_vmem = tb * padded_tn * row_bytes
    vmem_limit = int(max(2 * block_vmem + 2 * row_bytes + (1 << 20), 16 << 20))

    out = pl.pallas_call(
        _broadcast_token_kernel,
        out_shape=jax.ShapeDtypeStruct((b, n, dim), dtype),
        grid=grid,
        in_specs=[pl.BlockSpec((1, 1, dim), lambda i, j: (0, 0, 0))],   # resident token
        out_specs=pl.BlockSpec((tb, tn, dim), lambda i, j: (i, j, 0)),
        compiler_params=pltpu.CompilerParams(
            dimension_semantics=("parallel", "parallel"),   # v7x: 2 TCs split grid
            vmem_limit_bytes=vmem_limit,
        ),
        cost_estimate=pl.CostEstimate(
            flops=0,
            transcendentals=0,
            bytes_accessed=int(b * n * dim * itemsize + dim * itemsize),
        ),
    )(token.reshape(1, 1, dim))

    return out


def init_learnable_token(key, dim, std=0.02, dtype=jnp.float32):
    # nn.init.trunc_normal_(t, std=0.02): N(0, std) truncated to [-2, 2].
    u = jax.random.truncated_normal(key, -2.0, 2.0, (dim,), dtype=jnp.float32)
    return (u * std).astype(dtype)


def _check(b, n, dim, key):
    k_tok, k_x = jax.random.split(key)
    x = jax.random.normal(k_x, (b, n, dim), dtype=jnp.float32)
    token = init_learnable_token(k_tok, dim)

    out = jax.block_until_ready(learnable_masked_token_forward(x, token))
    ref = jnp.broadcast_to(token[None, None, :], (b, n, dim))

    assert out.shape == (b, n, dim), out.shape
    assert out.dtype == token.dtype, out.dtype
    assert jnp.array_equal(out, ref), f"mismatch vs reference (b={b}, n={n}, dim={dim})"


if __name__ == "__main__":
    key = jax.random.PRNGKey(0)
    k0, k1, k2, k3 = jax.random.split(key, 4)

    # Main case matching the module's usage: batch=2, seq=8, hidden=32.
    _check(b=2, n=8, dim=32, key=k0)
    # dim a multiple of 128 -> lane-dense stores.
    _check(b=2, n=16, dim=256, key=k1)
    # Awkward dim / short seq -> full-extent blocks, no padding hazards.
    _check(b=2, n=3, dim=48, key=k2)
    # Multi-MiB output -> exercises 8 MiB blocks + forced >=4-step grid.
    _check(b=2, n=4096, dim=256, key=k3)

    print("KERNEL_OK")
</pallas_src>

<mosaic_0001>
module attributes {stable_mosaic.version = 11 : i64} {
  func.func @_broadcast_token_kernel(%arg0: i32, %arg1: i32, %arg2: memref<1x1x32xf32, #tpu.memory_space<vmem>>, %arg3: memref<2x8x32xf32, #tpu.memory_space<vmem>>) attributes {dimension_semantics = [#tpu.dimension_semantics<parallel>, #tpu.dimension_semantics<parallel>], iteration_bounds = array<i64: 1, 1>, scalar_prefetch = 0 : i64, scratch_operands = 0 : i64, tpu.core_type = #tpu.core_type<tc>, window_params = [{pipeline_mode = #tpu.pipeline_mode<synchronous>, transform_indices = @transform_0, window_bounds = array<i64: 1, 1, 32>}, {transform_indices = @transform_1, window_bounds = array<i64: 2, 8, 32>}]} {
    %c0 = arith.constant 0 : index
    %c0_0 = arith.constant 0 : index
    %c0_1 = arith.constant 0 : index
    %0 = vector.load %arg2[%c0, %c0_0, %c0_1] : memref<1x1x32xf32, #tpu.memory_space<vmem>>, vector<1x1x32xf32>
    %1 = vector.shape_cast %0 : vector<1x1x32xf32> to vector<1x1x32xf32>
    %2 = vector.broadcast %1 : vector<1x1x32xf32> to vector<2x8x32xf32>
    %c0_2 = arith.constant 0 : index
    %c0_3 = arith.constant 0 : index
    %c0_4 = arith.constant 0 : index
    %3 = vector.load %arg3[%c0_2, %c0_3, %c0_4] : memref<2x8x32xf32, #tpu.memory_space<vmem>>, vector<2x8x32xf32>
    tpu.vector_store %arg3[%c0_2, %c0_3, %c0_4], %2 {strides = array<i32>} : memref<2x8x32xf32, #tpu.memory_space<vmem>>, vector<2x8x32xf32>,
    return
  }
  func.func @transform_0(%arg0: i32, %arg1: i32) -> (i32, i32, i32) {
    %c0_i32 = arith.constant 0 : i32
    %c0_i32_0 = arith.constant 0 : i32
    %c0_i32_1 = arith.constant 0 : i32
    %c0_i32_2 = arith.constant 0 : i32
    return %c0_i32, %c0_i32_0, %c0_i32_1 : i32, i32, i32
  }
  func.func @transform_1(%arg0: i32, %arg1: i32) -> (i32, i32, i32) {
    %c0_i32 = arith.constant 0 : i32
    %c0_i32_0 = arith.constant 0 : i32
    return %arg0, %arg1, %c0_i32 : i32, i32, i32
  }
}

</mosaic_0001>

<llo_original>
// kernel: tpu_custom_call.1
$region0: #{tpu_custom_call.1}
  #allocation0 [shape = 'u32[]', space=smem, size = 0x4, offset = 0x4, fixed_abs, tag = 'smem constant byte address 0x4 - core index']
  #allocation1 [shape = 'u32[144,128]{1,0:T(1,128)}', space=vmem, size = 0x12000, scoped, tag = 'internal scratch']
  %s0 = inlined_call_operand.hbm [shape: f32[1,1,32], index: 0, kind: input, shape index: {}]
  %s1 = inlined_call_operand.hbm [shape: f32[2,8,32], index: 1, kind: output, shape index: {}]
  %s2 = sld [smem:[#allocation0]]
  $region18: #{tpu_custom_call.1} parent=0
    _
  %s4 = ssub.s32 1, %s2
  %s5 = scalar_select 0, %s4, %s2
  $region1: #{tpu_custom_call.1} parent=0
    #allocation2 [shape = 'u8[512]{0}', space=vmem, size = 0x400, scoped, tag = 'input window, operand 0, single buffered']
    #allocation3 [shape = 's32[1]{0}', space=sflag, size = 0x4, scoped, tag = 'scoped memory for tpu_custom_call.1']
    #allocation4 [shape = 's32[1]{0}', space=sflag, size = 0x4, scoped, tag = 'scoped memory for tpu_custom_call.1']
    #allocation5 [shape = 'u8[8192]{0}', space=vmem, size = 0x2000, scoped, tag = 'output window, operand 0, single buffered']
    %6 = vsyncpa [#allocation3], 0
    %7 = vsyncpa [#allocation4], 0
    // Predicated region
    $region2: #{tpu_custom_call.1} parent=1 // pred_check
      _
    $region3: #{tpu_custom_call.1} parent=1 // pred_check_branch
      %9 = sbr.rel (0) target = $region5
    $region4: #{tpu_custom_call.1} parent=1 // pred_region
      %s11 = ssub.s32 16, 16
      %12 = vsyncadd [#allocation3], %s11
      %s14 = sshll.u32 [#allocation2], 4
      %s15 = int_to_ptr.vmem [resolvable:$true] %s14
      %17 = dma.hbm_to_vmem [thread:$0]  %s0, 16, %s15, [#allocation3]
    $region5: #{tpu_custom_call.1} parent=1 // pred_fallthru
      _
    // Predicated region
    $region6: #{tpu_custom_call.1} parent=1 // pred_check
      _
    $region7: #{tpu_custom_call.1} parent=1 // pred_check_branch
      %19 = sbr.rel (0) target = $region9
    $region8: #{tpu_custom_call.1} parent=1 // pred_region
      %20 = dma.done [#allocation3], 16
    $region9: #{tpu_custom_call.1} parent=1 // pred_fallthru
      _
    %v21 = vld [vmem:[#allocation2] sm:$0x1]
    %v23 = vlaneseq
    %v24 = vshrl.u32 %v23, 7
    %v25 = vsub.s32 0, %v24
    %v26 = vrot.slane %v21, %v25
    %vm28 = vcmask 261120
    %29 = vst.msk [vmem:[#allocation5] sm:$0xff] %vm28, %v26
    %30 = vst.msk [vmem:[#allocation5 + $0x8] sm:$0xff] %vm28, %v26
    // Predicated region
    $region10: #{tpu_custom_call.1} parent=1 // pred_check
      _
    $region11: #{tpu_custom_call.1} parent=1 // pred_check_branch
      %32 = sbr.rel (0) target = $region13
    $region12: #{tpu_custom_call.1} parent=1 // pred_region
      %s34 = ssub.s32 256, 256
      %35 = vsyncadd [#allocation4], %s34
      %s36 = sshll.u32 [#allocation5], 4
      %s37 = int_to_ptr.vmem [resolvable:$true] %s36
      %42 = dma.vmem_to_hbm [thread:$0]  %s37, 256, %s1, [#allocation4], 128, 128, 8
    $region13: #{tpu_custom_call.1} parent=1 // pred_fallthru
      _
    // Predicated region
    $region14: #{tpu_custom_call.1} parent=1 // pred_check
      _
    $region15: #{tpu_custom_call.1} parent=1 // pred_check_branch
      %44 = sbr.rel (0) target = $region17
    $region16: #{tpu_custom_call.1} parent=1 // pred_region
      %45 = dma.done [#allocation4], 256
    $region17: #{tpu_custom_call.1} parent=1 // pred_fallthru
      _
    %46 = vsyncpa [#allocation3], 1
    %47 = vsyncpa [#allocation4], 1

</llo_original>
